<compile_context>
chip_gen: v6e
topology: v6e:2x2x1
jax: 0.10.0
libtpu: 0.0.40
codegen_flags: <defaults>
</compile_context>

<pallas_src>
import jax
import jax.numpy as jnp
import numpy as np
from jax.experimental import pallas as pl
from jax.experimental.pallas import tpu as pltpu

A_DIM = 6
H = 128                      # hidden width of every branch
S_DIM = (6, 8)               # state layout after x.view([-1, 6, 8])
KIN = 56                     # 48 flattened features + 1 ones column + 7 zero pad
CAT = 6 * H                  # 768 = width of the concatenated branch activations
SLAB_ROWS = 144              # row 0: b6 | row 8: padded b7 | rows 16:144: padded W7.T


# ----------------------------------------------------------------------------
# Pallas kernel: entire forward pass in three MXU matmuls
# ----------------------------------------------------------------------------
def actor_kernel(x_ref, wblk_ref, w6_ref, slab_ref, o_ref):
    xa = x_ref[...]                                                    # (B, 56) f32

    # --- all six branch linears (+ biases, via the ones column) as one matmul
    h_pre = jnp.dot(xa, wblk_ref[...],
                    preferred_element_type=jnp.float32)                # (B, 768)

    # split_0..split_4 get ReLU; split_5 (cols 640:768) does NOT (matches the module)
    col = jax.lax.broadcasted_iota(jnp.int32, h_pre.shape, 1)
    h = jnp.where(col < 5 * H, jnp.maximum(h_pre, 0.0), h_pre)         # (B, 768)

    # --- linear6 + bias + relu (bf16 weights, f32 accumulation)
    z = jnp.dot(h.astype(jnp.bfloat16), w6_ref[...],
                preferred_element_type=jnp.float32)                    # (B, 128)
    z = jnp.maximum(z + slab_ref[0:1, :], 0.0)

    # --- linear7: lane-dense padded (128,128) weight; logits live in cols 0:A_DIM
    o_ref[...] = (jnp.dot(z, slab_ref[16:16 + H, :],
                          preferred_element_type=jnp.float32)
                  + slab_ref[8:9, :])                                  # (B, 128)


# ----------------------------------------------------------------------------
# Host-side parameter packing (done once)
# ----------------------------------------------------------------------------
def pack_params(params):
    (W0, b0, W1, b1, W2, b2, W3, b3, W4, b4, W5, b5, W6, b6, W7, b7) = params

    # Block-diagonal branch weight: rows = flattened state index (r*8 + c),
    # plus row 48 = bias row (multiplied by the ones column of the input).
    wblk = jnp.zeros((KIN, CAT), jnp.float32)
    wblk = wblk.at[7, 0 * H:1 * H].set(W0[:, 0])        # split_0: x[0, 7]
    wblk = wblk.at[15, 1 * H:2 * H].set(W1[:, 0])       # split_1: x[1, 7]
    wblk = wblk.at[16:24, 2 * H:3 * H].set(W2.T)        # split_2: x[2, 0:8]
    wblk = wblk.at[24:32, 3 * H:4 * H].set(W3.T)        # split_3: x[3, 0:8]
    wblk = wblk.at[32:38, 4 * H:5 * H].set(W4.T)        # split_4: x[4, 0:6]
    wblk = wblk.at[47, 5 * H:6 * H].set(W5[:, 0])       # split_5: x[5, 7] (no relu)
    wblk = wblk.at[48, 0 * H:1 * H].set(b0)
    wblk = wblk.at[48, 1 * H:2 * H].set(b1)
    wblk = wblk.at[48, 2 * H:3 * H].set(b2)
    wblk = wblk.at[48, 3 * H:4 * H].set(b3)
    wblk = wblk.at[48, 4 * H:5 * H].set(b4)
    wblk = wblk.at[48, 5 * H:6 * H].set(b5)

    w6t_bf16 = W6.T.astype(jnp.bfloat16)                # (768, 128)

    # Coalesced small-parameter slab (all offsets 8-aligned).
    slab = jnp.zeros((SLAB_ROWS, H), jnp.float32)
    slab = slab.at[0, :].set(b6)                        # b6
    slab = slab.at[8, :A_DIM].set(b7)                   # b7 padded to 128 lanes
    slab = slab.at[16:16 + H, :A_DIM].set(W7.T)         # W7.T padded to (128, 128)
    return wblk, w6t_bf16, slab


def actor_forward(x, packed):
    wblk, w6t_bf16, slab = packed
    x2 = x.reshape(-1, S_DIM[0] * S_DIM[1]).astype(jnp.float32)        # (B, 48)
    B = x2.shape[0]
    xa = jnp.concatenate(
        [x2, jnp.ones((B, 1), jnp.float32), jnp.zeros((B, KIN - 49), jnp.float32)],
        axis=1)                                                        # (B, 56)

    vmem = pl.BlockSpec(memory_space=pltpu.MemorySpace.VMEM)
    out = pl.pallas_call(
        actor_kernel,
        out_shape=jax.ShapeDtypeStruct((B, H), jnp.float32),
        in_specs=[vmem, vmem, vmem, vmem],
        out_specs=vmem,
    )(xa, wblk, w6t_bf16, slab)
    return out[:, :A_DIM]                                              # (B, 6)


# ----------------------------------------------------------------------------
# Pure-JAX reference (direct transcription of the PyTorch forward), f32
# ----------------------------------------------------------------------------
def reference_forward(x, params):
    (W0, b0, W1, b1, W2, b2, W3, b3, W4, b4, W5, b5, W6, b6, W7, b7) = params
    x = x.reshape(-1, S_DIM[0], S_DIM[1])
    relu = lambda v: jnp.maximum(v, 0.0)

    s0 = relu(x[:, 0, 7:8] @ W0.T + b0)          # linear0
    s1 = relu(x[:, 1, 7:8] @ W1.T + b1)          # linear1
    s2 = relu(x[:, 2, :] @ W2.T + b2)            # linear2 (+ flatten, already 2D)
    s3 = relu(x[:, 3, :] @ W3.T + b3)            # linear3
    s4 = relu(x[:, 4, :A_DIM] @ W4.T + b4)       # linear4
    s5 = x[:, 5, 7:8] @ W5.T + b5                # linear5 (NO relu)

    cat = jnp.concatenate([s0, s1, s2, s3, s4, s5], axis=1)            # (B, 768)
    h = relu(cat @ W6.T + b6)
    return h @ W7.T + b7                                               # (B, 6)


# ----------------------------------------------------------------------------
if __name__ == "__main__":
    key = jax.random.PRNGKey(0)
    ks = jax.random.split(key, 20)
    sc = 0.05
    params = (
        sc * jax.random.normal(ks[0], (H, 1), jnp.float32),    # linear0 W
        sc * jax.random.normal(ks[1], (H,), jnp.float32),      # linear0 b
        sc * jax.random.normal(ks[2], (H, 1), jnp.float32),    # linear1 W
        sc * jax.random.normal(ks[3], (H,), jnp.float32),      # linear1 b
        sc * jax.random.normal(ks[4], (H, 8), jnp.float32),    # linear2 W
        sc * jax.random.normal(ks[5], (H,), jnp.float32),      # linear2 b
        sc * jax.random.normal(ks[6], (H, 8), jnp.float32),    # linear3 W
        sc * jax.random.normal(ks[7], (H,), jnp.float32),      # linear3 b
        sc * jax.random.normal(ks[8], (H, A_DIM), jnp.float32),# linear4 W
        sc * jax.random.normal(ks[9], (H,), jnp.float32),      # linear4 b
        sc * jax.random.normal(ks[10], (H, 1), jnp.float32),   # linear5 W
        sc * jax.random.normal(ks[11], (H,), jnp.float32),     # linear5 b
        sc * jax.random.normal(ks[12], (H, CAT), jnp.float32), # linear6 W
        sc * jax.random.normal(ks[13], (H,), jnp.float32),     # linear6 b
        sc * jax.random.normal(ks[14], (A_DIM, H), jnp.float32),  # linear7 W
        sc * jax.random.normal(ks[15], (A_DIM,), jnp.float32),    # linear7 b
    )

    # batch of 8 states (sublane-aligned M; the module's view([-1, 6, 8]) handles any B)
    x = jax.random.normal(ks[16], (8, S_DIM[0], S_DIM[1]), jnp.float32)

    packed = pack_params(params)
    out = actor_forward(x, packed)
    jax.block_until_ready(out)

    ref = reference_forward(x, params)
    np.testing.assert_allclose(np.asarray(out), np.asarray(ref), rtol=2e-2, atol=2e-2)
    assert out.shape == (8, A_DIM)
    print("KERNEL_OK")
</pallas_src>

<mosaic_0001>
module attributes {stable_mosaic.version = 11 : i64} {
  func.func @actor_kernel(%arg0: memref<8x56xf32, #tpu.memory_space<vmem>>, %arg1: memref<56x768xf32, #tpu.memory_space<vmem>>, %arg2: memref<768x128xbf16, #tpu.memory_space<vmem>>, %arg3: memref<144x128xf32, #tpu.memory_space<vmem>>, %arg4: memref<8x128xf32, #tpu.memory_space<vmem>>) attributes {dimension_semantics = [], scalar_prefetch = 0 : i64, scratch_operands = 0 : i64, tpu.core_type = #tpu.core_type<tc>} {
    %c0 = arith.constant 0 : index
    %c0_0 = arith.constant 0 : index
    %0 = vector.load %arg0[%c0, %c0_0] : memref<8x56xf32, #tpu.memory_space<vmem>>, vector<8x56xf32>
    %c0_1 = arith.constant 0 : index
    %c0_2 = arith.constant 0 : index
    %1 = vector.load %arg1[%c0_1, %c0_2] : memref<56x768xf32, #tpu.memory_space<vmem>>, vector<56x768xf32>
    %cst = arith.constant dense<0.000000e+00> : vector<8x768xf32>
    %2 = tpu.matmul %0, %1, %cst {dimension_numbers = #tpu.dot_dimension_numbers<[1], [0], [0], [1], [0, 0, 1, 1], [], []>} : vector<8x56xf32>, vector<56x768xf32>, vector<8x768xf32> -> vector<8x768xf32>
    %3 = tpu.iota {dimensions = array<i32: 1>} : vector<8x768xi32>
    %c640_i32 = arith.constant 640 : i32
    %4 = vector.broadcast %c640_i32 : i32 to vector<8x768xi32>
    %5 = arith.cmpi slt, %3, %4 : vector<8x768xi32>
    %cst_3 = arith.constant 0.000000e+00 : f32
    %6 = vector.broadcast %cst_3 : f32 to vector<8x768xf32>
    %7 = arith.maximumf %2, %6 : vector<8x768xf32>
    %8 = arith.select %5, %7, %2 : vector<8x768xi1>, vector<8x768xf32>
    %9 = arith.truncf %8 : vector<8x768xf32> to vector<8x768xbf16>
    %c0_4 = arith.constant 0 : index
    %c0_5 = arith.constant 0 : index
    %10 = vector.load %arg2[%c0_4, %c0_5] : memref<768x128xbf16, #tpu.memory_space<vmem>>, vector<768x128xbf16>
    %cst_6 = arith.constant dense<0.000000e+00> : vector<8x128xf32>
    %11 = tpu.matmul %9, %10, %cst_6 {dimension_numbers = #tpu.dot_dimension_numbers<[1], [0], [0], [1], [0, 0, 1, 1], [], []>} : vector<8x768xbf16>, vector<768x128xbf16>, vector<8x128xf32> -> vector<8x128xf32>
    %c0_7 = arith.constant 0 : index
    %c0_8 = arith.constant 0 : index
    %12 = vector.load %arg3[%c0_7, %c0_8] : memref<144x128xf32, #tpu.memory_space<vmem>>, vector<1x128xf32>
    %13 = vector.broadcast %12 : vector<1x128xf32> to vector<8x128xf32>
    %14 = arith.addf %11, %13 : vector<8x128xf32>
    %cst_9 = arith.constant 0.000000e+00 : f32
    %15 = vector.broadcast %cst_9 : f32 to vector<8x128xf32>
    %16 = arith.maximumf %14, %15 : vector<8x128xf32>
    %c16 = arith.constant 16 : index
    %c0_10 = arith.constant 0 : index
    %17 = vector.load %arg3[%c16, %c0_10] : memref<144x128xf32, #tpu.memory_space<vmem>>, vector<128x128xf32>
    %cst_11 = arith.constant dense<0.000000e+00> : vector<8x128xf32>
    %18 = tpu.matmul %16, %17, %cst_11 {dimension_numbers = #tpu.dot_dimension_numbers<[1], [0], [0], [1], [0, 0, 1, 1], [], []>} : vector<8x128xf32>, vector<128x128xf32>, vector<8x128xf32> -> vector<8x128xf32>
    %c8 = arith.constant 8 : index
    %c0_12 = arith.constant 0 : index
    %19 = vector.load %arg3[%c8, %c0_12] : memref<144x128xf32, #tpu.memory_space<vmem>>, vector<1x128xf32>
    %20 = vector.broadcast %19 : vector<1x128xf32> to vector<8x128xf32>
    %21 = arith.addf %18, %20 : vector<8x128xf32>
    %c0_13 = arith.constant 0 : index
    %c0_14 = arith.constant 0 : index
    %22 = vector.load %arg4[%c0_13, %c0_14] : memref<8x128xf32, #tpu.memory_space<vmem>>, vector<8x128xf32>
    tpu.vector_store %arg4[%c0_13, %c0_14], %21 {strides = array<i32>} : memref<8x128xf32, #tpu.memory_space<vmem>>, vector<8x128xf32>,
    return
  }
}

</mosaic_0001>

<llo_original>
// kernel: tpu_custom_call.1
$region0: #{tpu_custom_call.1}
  #allocation0 [shape = 'u32[]', space=smem, size = 0x4, offset = 0x4, fixed_abs, tag = 'smem constant byte address 0x4 - core index']
  #allocation1 [shape = 'u32[144,128]{1,0:T(1,128)}', space=vmem, size = 0x12000, scoped, tag = 'internal scratch']
  %s0 = inlined_call_operand.hbm [shape: f32[8,56], index: 0, kind: input, shape index: {}]
  %s1 = inlined_call_operand.hbm [shape: f32[56,768], index: 1, kind: input, shape index: {}]
  %s2 = inlined_call_operand.hbm [shape: bf16[768,128], index: 2, kind: input, shape index: {}]
  %s3 = inlined_call_operand.hbm [shape: f32[144,128], index: 3, kind: input, shape index: {}]
  %s4 = inlined_call_operand.hbm [shape: f32[8,128], index: 4, kind: output, shape index: {}]
  %s5 = sld [smem:[#allocation0]]
  $region42: #{tpu_custom_call.1} parent=0
    _
  %s7 = ssub.s32 1, %s5
  %s8 = scalar_select 0, %s7, %s5
  $region1: #{tpu_custom_call.1} parent=0
    #allocation2 [shape = 'u8[4096]{0}', space=vmem, size = 0x1000, scoped, tag = 'input window, operand 0, single buffered']
    #allocation3 [shape = 's32[1]{0}', space=sflag, size = 0x4, scoped, tag = 'scoped memory for tpu_custom_call.1']
    #allocation4 [shape = 's32[1]{0}', space=sflag, size = 0x4, scoped, tag = 'scoped memory for tpu_custom_call.1']
    #allocation5 [shape = 'u8[172032]{0}', space=vmem, size = 0x2a000, scoped, tag = 'input window, operand 1, single buffered']
    #allocation6 [shape = 's32[1]{0}', space=sflag, size = 0x4, scoped, tag = 'scoped memory for tpu_custom_call.1']
    #allocation7 [shape = 'u8[196608]{0}', space=vmem, size = 0x30000, scoped, tag = 'input window, operand 2, single buffered']
    #allocation8 [shape = 'u8[73728]{0}', space=vmem, size = 0x12000, scoped, tag = 'input window, operand 3, single buffered']
    #allocation9 [shape = 's32[1]{0}', space=sflag, size = 0x4, scoped, tag = 'scoped memory for tpu_custom_call.1']
    #allocation10 [shape = 'u8[4096]{0}', space=vmem, size = 0x1000, scoped, tag = 'output window, operand 0, single buffered']
    %9 = vsyncpa [#allocation3], 0
    %10 = vsyncpa [#allocation6], 0
    %11 = vsyncpa [#allocation9], 0
    %12 = vsyncpa [#allocation4], 0
    // Predicated region
    $region2: #{tpu_custom_call.1} parent=1 // pred_check
      _
    $region3: #{tpu_custom_call.1} parent=1 // pred_check_branch
      %14 = sbr.rel (0) target = $region5
    $region4: #{tpu_custom_call.1} parent=1 // pred_region
      %s16 = ssub.s32 128, 128
      %17 = vsyncadd [#allocation3], %s16
      %s19 = sshll.u32 [#allocation2], 4
      %s20 = int_to_ptr.vmem [resolvable:$true] %s19
      %22 = dma.hbm_to_vmem [thread:$0]  %s0, 128, %s20, [#allocation3]
    $region5: #{tpu_custom_call.1} parent=1 // pred_fallthru
      _
    // Predicated region
    $region6: #{tpu_custom_call.1} parent=1 // pred_check
      _
    $region7: #{tpu_custom_call.1} parent=1 // pred_check_branch
      %24 = sbr.rel (0) target = $region9
    $region8: #{tpu_custom_call.1} parent=1 // pred_region
      %s26 = ssub.s32 5376, 5376
      %27 = vsyncadd [#allocation6], %s26
      %s28 = sshll.u32 [#allocation5], 4
      %s29 = int_to_ptr.vmem [resolvable:$true] %s28
      %34 = dma.hbm_to_vmem [thread:$0]  %s1, 5376, %s29, [#allocation6], 768, 768, 48
    $region9: #{tpu_custom_call.1} parent=1 // pred_fallthru
      _
    // Predicated region
    $region10: #{tpu_custom_call.1} parent=1 // pred_check
      _
    $region11: #{tpu_custom_call.1} parent=1 // pred_check_branch
      %36 = sbr.rel (0) target = $region13
    $region12: #{tpu_custom_call.1} parent=1 // pred_region
      %s38 = ssub.s32 6144, 6144
      %39 = vsyncadd [#allocation6], %s38
      %s40 = sshll.u32 [#allocation7], 4
      %s41 = int_to_ptr.vmem [resolvable:$true] %s40
      %46 = dma.hbm_to_vmem [thread:$0]  %s2, 6144, %s41, [#allocation6], 64, 64, 4
    $region13: #{tpu_custom_call.1} parent=1 // pred_fallthru
      _
    // Predicated region
    $region14: #{tpu_custom_call.1} parent=1 // pred_check
      _
    $region15: #{tpu_custom_call.1} parent=1 // pred_check_branch
      %48 = sbr.rel (0) target = $region17
    $region16: #{tpu_custom_call.1} parent=1 // pred_region
      %s50 = ssub.s32 2304, 2304
      %51 = vsyncadd [#allocation9], %s50
      %s52 = sshll.u32 [#allocation8], 4
      %s53 = int_to_ptr.vmem [resolvable:$true] %s52
      %58 = dma.hbm_to_vmem [thread:$0]  %s3, 2304, %s53, [#allocation9], 128, 128, 8
    $region17: #{tpu_custom_call.1} parent=1 // pred_fallthru
      _
    // Predicated region
    $region18: #{tpu_custom_call.1} parent=1 // pred_check
      _
    $region19: #{tpu_custom_call.1} parent=1 // pred_check_branch
      %60 = sbr.rel (0) target = $region21
    $region20: #{tpu_custom_call.1} parent=1 // pred_region
      %61 = dma.done [#allocation3], 128
    $region21: #{tpu_custom_call.1} parent=1 // pred_fallthru
      _
    // Predicated region
    $region22: #{tpu_custom_call.1} parent=1 // pred_check
      _
    $region23: #{tpu_custom_call.1} parent=1 // pred_check_branch
      %63 = sbr.rel (0) target = $region25
    $region24: #{tpu_custom_call.1} parent=1 // pred_region
      %64 = dma.done [#allocation6], 5376
    $region25: #{tpu_custom_call.1} parent=1 // pred_fallthru
      _
    // Predicated region
    $region26: #{tpu_custom_call.1} parent=1 // pred_check
      _
    $region27: #{tpu_custom_call.1} parent=1 // pred_check_branch
      %66 = sbr.rel (0) target = $region29
    $region28: #{tpu_custom_call.1} parent=1 // pred_region
      %67 = dma.done [#allocation6], 6144
    $region29: #{tpu_custom_call.1} parent=1 // pred_fallthru
      _
    // Predicated region
    $region30: #{tpu_custom_call.1} parent=1 // pred_check
      _
    $region31: #{tpu_custom_call.1} parent=1 // pred_check_branch
      %69 = sbr.rel (0) target = $region33
    $region32: #{tpu_custom_call.1} parent=1 // pred_region
      %70 = dma.done [#allocation9], 2304
    $region33: #{tpu_custom_call.1} parent=1 // pred_fallthru
      _
    %v72 = vld [vmem:[#allocation2] sm:$0xff]
    %v73 = vld [vmem:[#allocation5] sm:$0xff]
    %v74 = vld [vmem:[#allocation5 + $0x8] sm:$0xff]
    %v75 = vld [vmem:[#allocation5 + $0x10] sm:$0xff]
    %v76 = vld [vmem:[#allocation5 + $0x18] sm:$0xff]
    %v77 = vld [vmem:[#allocation5 + $0x20] sm:$0xff]
    %v78 = vld [vmem:[#allocation5 + $0x28] sm:$0xff]
    %v79 = vld [vmem:[#allocation5 + $0x30] sm:$0xff]
    %v80 = vld [vmem:[#allocation5 + $0x38] sm:$0xff]
    %v81 = vld [vmem:[#allocation5 + $0x40] sm:$0xff]
    %v82 = vld [vmem:[#allocation5 + $0x48] sm:$0xff]
    %v83 = vld [vmem:[#allocation5 + $0x50] sm:$0xff]
    %v84 = vld [vmem:[#allocation5 + $0x58] sm:$0xff]
    %v85 = vld [vmem:[#allocation5 + $0x60] sm:$0xff]
    %v86 = vld [vmem:[#allocation5 + $0x68] sm:$0xff]
    %v87 = vld [vmem:[#allocation5 + $0x70] sm:$0xff]
    %v88 = vld [vmem:[#allocation5 + $0x78] sm:$0xff]
    %v89 = vld [vmem:[#allocation5 + $0x80] sm:$0xff]
    %v90 = vld [vmem:[#allocation5 + $0x88] sm:$0xff]
    %v91 = vld [vmem:[#allocation5 + $0x90] sm:$0xff]
    %v92 = vld [vmem:[#allocation5 + $0x98] sm:$0xff]
    %v93 = vld [vmem:[#allocation5 + $0xa0] sm:$0xff]
    %v94 = vld [vmem:[#allocation5 + $0xa8] sm:$0xff]
    %v95 = vld [vmem:[#allocation5 + $0xb0] sm:$0xff]
    %v96 = vld [vmem:[#allocation5 + $0xb8] sm:$0xff]
    %v97 = vld [vmem:[#allocation5 + $0xc0] sm:$0xff]
    %v98 = vld [vmem:[#allocation5 + $0xc8] sm:$0xff]
    %v99 = vld [vmem:[#allocation5 + $0xd0] sm:$0xff]
    %v100 = vld [vmem:[#allocation5 + $0xd8] sm:$0xff]
    %v101 = vld [vmem:[#allocation5 + $0xe0] sm:$0xff]
    %v102 = vld [vmem:[#allocation5 + $0xe8] sm:$0xff]
    %v103 = vld [vmem:[#allocation5 + $0xf0] sm:$0xff]
    %v104 = vld [vmem:[#allocation5 + $0xf8] sm:$0xff]
    %v105 = vld [vmem:[#allocation5 + $0x100] sm:$0xff]
    %v106 = vld [vmem:[#allocation5 + $0x108] sm:$0xff]
    %v107 = vld [vmem:[#allocation5 + $0x110] sm:$0xff]
    %v108 = vld [vmem:[#allocation5 + $0x118] sm:$0xff]
    %v109 = vld [vmem:[#allocation5 + $0x120] sm:$0xff]
    %v110 = vld [vmem:[#allocation5 + $0x128] sm:$0xff]
    %v111 = vld [vmem:[#allocation5 + $0x130] sm:$0xff]
    %v112 = vld [vmem:[#allocation5 + $0x138] sm:$0xff]
    %v113 = vld [vmem:[#allocation5 + $0x140] sm:$0xff]
    %v114 = vld [vmem:[#allocation5 + $0x148] sm:$0xff]
    %vm115 = vcmask 457728
    %v117 = vsel %vm115, %v72, 0
    %119 = vmatprep.subr.mxu0 0.0
    %120 = vmatpush1.msra.mxu0 0.0
    %121 = vmatprep.subr.mxu0 0.0
    %122 = vmatpush1.msra.mxu0 0.0
    %123 = vmatprep.subr.mxu0 0.0
    %124 = vmatpush1.msra.mxu0 0.0
    %125 = vmatprep.subr.mxu0 0.0
    %126 = vmatpush1.msra.mxu0 0.0
    %127 = vmatprep.subr.mxu0 0.0
    %128 = vmatpush1.msra.mxu0 0.0
    %129 = vmatprep.subr.mxu0 0.0
    %130 = vmatpush1.msra.mxu0 0.0
    %131 = vmatprep.subr.mxu0 0.0
    %132 = vmatpush1.msra.mxu0 0.0
    %133 = vmatprep.subr.mxu0 0.0
    %134 = vmatpush1.msra.mxu0 0.0
    %135 = vmatprep.subr.mxu0 0.0
    %136 = vmatpush1.msra.mxu0 0.0
    %137 = vmatprep.subr.mxu0 %v110
    %138 = vmatpush1.msra.mxu0 %v109
    %139 = vmatprep.subr.mxu0 %v104
    %140 = vmatpush1.msra.mxu0 %v103
    %141 = vmatprep.subr.mxu0 %v98
    %142 = vmatpush1.msra.mxu0 %v97
    %143 = vmatprep.subr.mxu0 %v92
    %144 = vmatpush1.msra.mxu0 %v91
    %145 = vmatprep.subr.mxu0 %v86
    %146 = vmatpush1.msra.mxu0 %v85
    %147 = vmatprep.subr.mxu0 %v80
    %148 = vmatpush1.msra.mxu0 %v79
    %149 = vmatprep.subr.mxu0 %v74
    %150 = vmatpush1.msra.mxu0 %v73
    %151 = vmatprep.subr.mxu0 0.0
    %152 = vmatpush2.msra.mxu0 0.0
    %153 = vmatprep.subr.mxu0 0.0
    %154 = vmatpush2.msra.mxu0 0.0
    %155 = vmatprep.subr.mxu0 0.0
    %156 = vmatpush2.msra.mxu0 0.0
    %157 = vmatprep.subr.mxu0 0.0
    %158 = vmatpush2.msra.mxu0 0.0
    %159 = vmatprep.subr.mxu0 0.0
    %160 = vmatpush2.msra.mxu0 0.0
    %161 = vmatprep.subr.mxu0 0.0
    %162 = vmatpush2.msra.mxu0 0.0
    %163 = vmatprep.subr.mxu0 0.0
    %164 = vmatpush2.msra.mxu0 0.0
    %165 = vmatprep.subr.mxu0 0.0
    %166 = vmatpush2.msra.mxu0 0.0
    %167 = vmatprep.subr.mxu0 0.0
    %168 = vmatpush2.msra.mxu0 0.0
    %169 = vmatprep.subr.mxu0 0.0
    %170 = vmatpush2.msra.mxu0 0.0
    %171 = vmatprep.subr.mxu0 0.0
    %172 = vmatpush2.msra.mxu0 0.0
    %173 = vmatprep.subr.mxu0 0.0
    %174 = vmatpush2.msra.mxu0 0.0
    %175 = vmatprep.subr.mxu0 0.0
    %176 = vmatpush2.msra.mxu0 0.0
    %177 = vmatprep.subr.mxu0 0.0
    %178 = vmatpush2.msra.mxu0 0.0
    %179 = vmatprep.subr.mxu0 0.0
    %180 = vmatpush2.msra.mxu0 0.0
    %181 = vmatprep.subr.mxu0 0.0
    %182 = vmatpush2.msra.mxu0 0.0
    %183 = vmatprep.mubr.f32.mxu0 0.0
    %184 = vmatmul.mubr.f32.gmra.mxu0 %v117
    %v185 = vpop.f32.mrf.mxu0
    %v186 = vadd.f32 0.0, %v185
    %v187 = vpop.f32.mrf.mxu0
    %v188 = vadd.f32 0.0, %v187
    %189 = vdwg.mxu0
    %190 = vmatprep.subr.mxu0 0.0
    %191 = vmatpush1.msra.mxu0 0.0
    %192 = vmatprep.subr.mxu0 0.0
    %193 = vmatpush1.msra.mxu0 0.0
    %194 = vmatprep.subr.mxu0 0.0
    %195 = vmatpush1.msra.mxu0 0.0
    %196 = vmatprep.subr.mxu0 0.0
    %197 = vmatpush1.msra.mxu0 0.0
    %198 = vmatprep.subr.mxu0 0.0
    %199 = vmatpush1.msra.mxu0 0.0
    %200 = vmatprep.subr.mxu0 0.0
    %201 = vmatpush1.msra.mxu0 0.0
    %202 = vmatprep.subr.mxu0 0.0
    %203 = vmatpush1.msra.mxu0 0.0
    %204 = vmatprep.subr.mxu0 0.0
    %205 = vmatpush1.msra.mxu0 0.0
    %206 = vmatprep.subr.mxu0 0.0
    %207 = vmatpush1.msra.mxu0 0.0
    %208 = vmatprep.subr.mxu0 %v112
    %209 = vmatpush1.msra.mxu0 %v111
    %210 = vmatprep.subr.mxu0 %v106
    %211 = vmatpush1.msra.mxu0 %v105
    %212 = vmatprep.subr.mxu0 %v100
    %213 = vmatpush1.msra.mxu0 %v99
    %214 = vmatprep.subr.mxu0 %v94
    %215 = vmatpush1.msra.mxu0 %v93
    %216 = vmatprep.subr.mxu0 %v88
    %217 = vmatpush1.msra.mxu0 %v87
    %218 = vmatprep.subr.mxu0 %v82
    %219 = vmatpush1.msra.mxu0 %v81
    %220 = vmatprep.subr.mxu0 %v76
    %221 = vmatpush1.msra.mxu0 %v75
    %222 = vmatprep.subr.mxu0 0.0
    %223 = vmatpush2.msra.mxu0 0.0
    %224 = vmatprep.subr.mxu0 0.0
    %225 = vmatpush2.msra.mxu0 0.0
    %226 = vmatprep.subr.mxu0 0.0
    %227 = vmatpush2.msra.mxu0 0.0
    %228 = vmatprep.subr.mxu0 0.0
    %229 = vmatpush2.msra.mxu0 0.0
    %230 = vmatprep.subr.mxu0 0.0
    %231 = vmatpush2.msra.mxu0 0.0
    %232 = vmatprep.subr.mxu0 0.0
    %233 = vmatpush2.msra.mxu0 0.0
    %234 = vmatprep.subr.mxu0 0.0
    %235 = vmatpush2.msra.mxu0 0.0
    %236 = vmatprep.subr.mxu0 0.0
    %237 = vmatpush2.msra.mxu0 0.0
    %238 = vmatprep.subr.mxu0 0.0
    %239 = vmatpush2.msra.mxu0 0.0
    %240 = vmatprep.subr.mxu0 0.0
    %241 = vmatpush2.msra.mxu0 0.0
    %242 = vmatprep.subr.mxu0 0.0
    %243 = vmatpush2.msra.mxu0 0.0
    %244 = vmatprep.subr.mxu0 0.0
    %245 = vmatpush2.msra.mxu0 0.0
    %246 = vmatprep.subr.mxu0 0.0
    %247 = vmatpush2.msra.mxu0 0.0
    %248 = vmatprep.subr.mxu0 0.0
    %249 = vmatpush2.msra.mxu0 0.0
    %250 = vmatprep.subr.mxu0 0.0
    %251 = vmatpush2.msra.mxu0 0.0
    %252 = vmatprep.subr.mxu0 0.0
    %253 = vmatpush2.msra.mxu0 0.0
    %254 = vmatprep.mubr.f32.mxu0 0.0
    %255 = vmatmul.mubr.f32.gmra.mxu0 %v117
    %v256 = vpop.f32.mrf.mxu0
    %v257 = vadd.f32 0.0, %v256
    %v258 = vpop.f32.mrf.mxu0
    %v259 = vadd.f32 0.0, %v258
    %260 = vdwg.mxu0
    %261 = vmatprep.subr.mxu0 0.0
    %262 = vmatpush1.msra.mxu0 0.0
    %263 = vmatprep.subr.mxu0 0.0
    %264 = vmatpush1.msra.mxu0 0.0
    %265 = vmatprep.subr.mxu0 0.0
    %266 = vmatpush1.msra.mxu0 0.0
    %267 = vmatprep.subr.mxu0 0.0
    %268 = vmatpush1.msra.mxu0 0.0
    %269 = vmatprep.subr.mxu0 0.0
    %270 = vmatpush1.msra.mxu0 0.0
    %271 = vmatprep.subr.mxu0 0.0
    %272 = vmatpush1.msra.mxu0 0.0
    %273 = vmatprep.subr.mxu0 0.0
    %274 = vmatpush1.msra.mxu0 0.0
    %275 = vmatprep.subr.mxu0 0.0
    %276 = vmatpush1.msra.mxu0 0.0
    %277 = vmatprep.subr.mxu0 0.0
    %278 = vmatpush1.msra.mxu0 0.0
    %279 = vmatprep.subr.mxu0 %v114
    %280 = vmatpush1.msra.mxu0 %v113
    %281 = vmatprep.subr.mxu0 %v108
    %282 = vmatpush1.msra.mxu0 %v107
    %283 = vmatprep.subr.mxu0 %v102
    %284 = vmatpush1.msra.mxu0 %v101
    %285 = vmatprep.subr.mxu0 %v96
    %286 = vmatpush1.msra.mxu0 %v95
    %287 = vmatprep.subr.mxu0 %v90
    %288 = vmatpush1.msra.mxu0 %v89
    %289 = vmatprep.subr.mxu0 %v84
    %290 = vmatpush1.msra.mxu0 %v83
    %291 = vmatprep.subr.mxu0 %v78
    %292 = vmatpush1.msra.mxu0 %v77
    %293 = vmatprep.subr.mxu0 0.0
    %294 = vmatpush2.msra.mxu0 0.0
    %295 = vmatprep.subr.mxu0 0.0
    %296 = vmatpush2.msra.mxu0 0.0
    %297 = vmatprep.subr.mxu0 0.0
    %298 = vmatpush2.msra.mxu0 0.0
    %299 = vmatprep.subr.mxu0 0.0
    %300 = vmatpush2.msra.mxu0 0.0
    %301 = vmatprep.subr.mxu0 0.0
    %302 = vmatpush2.msra.mxu0 0.0
    %303 = vmatprep.subr.mxu0 0.0
    %304 = vmatpush2.msra.mxu0 0.0
    %305 = vmatprep.subr.mxu0 0.0
    %306 = vmatpush2.msra.mxu0 0.0
    %307 = vmatprep.subr.mxu0 0.0
    %308 = vmatpush2.msra.mxu0 0.0
    %309 = vmatprep.subr.mxu0 0.0
    %310 = vmatpush2.msra.mxu0 0.0
    %311 = vmatprep.subr.mxu0 0.0
    %312 = vmatpush2.msra.mxu0 0.0
    %313 = vmatprep.subr.mxu0 0.0
    %314 = vmatpush2.msra.mxu0 0.0
    %315 = vmatprep.subr.mxu0 0.0
    %316 = vmatpush2.msra.mxu0 0.0
    %317 = vmatprep.subr.mxu0 0.0
    %318 = vmatpush2.msra.mxu0 0.0
    %319 = vmatprep.subr.mxu0 0.0
    %320 = vmatpush2.msra.mxu0 0.0
    %321 = vmatprep.subr.mxu0 0.0
    %322 = vmatpush2.msra.mxu0 0.0
    %323 = vmatprep.subr.mxu0 0.0
    %324 = vmatpush2.msra.mxu0 0.0
    %325 = vmatprep.mubr.f32.mxu0 0.0
    %326 = vmatmul.mubr.f32.gmra.mxu0 %v117
    %v327 = vpop.f32.mrf.mxu0
    %v328 = vadd.f32 0.0, %v327
    %v329 = vpop.f32.mrf.mxu0
    %v330 = vadd.f32 0.0, %v329
    %331 = vdwg.mxu0
    %v332 = vlaneseq
    %v333 = vand.u32 %v332, 127
    %v334 = vadd.s32 %v333, 128
    %v335 = vadd.s32 %v333, 256
    %v336 = vadd.s32 %v333, 384
    %v337 = vadd.s32 %v333, 512
    %v338 = vadd.s32 %v333, 640
    %vm339 = vcmp.lt.s32.totalorder %v333, 640
    %vm340 = vcmp.lt.s32.totalorder %v334, 640
    %vm341 = vcmp.lt.s32.totalorder %v335, 640
    %vm342 = vcmp.lt.s32.totalorder %v336, 640
    %vm343 = vcmp.lt.s32.totalorder %v337, 640
    %vm344 = vcmp.lt.s32.totalorder %v338, 640
    %v345 = vmax.f32 %v186, 0.0
    %v346 = vmax.f32 %v188, 0.0
    %v347 = vmax.f32 %v257, 0.0
    %v348 = vmax.f32 %v259, 0.0
    %v349 = vmax.f32 %v328, 0.0
    %v350 = vmax.f32 %v330, 0.0
    %v351 = vsel %vm339, %v345, %v186
    %v352 = vsel %vm340, %v346, %v188
    %v353 = vsel %vm341, %v347, %v257
    %v354 = vsel %vm342, %v348, %v259
    %v355 = vsel %vm343, %v349, %v328
    %v356 = vsel %vm344, %v350, %v330
    %v357 = vpack.c.bf16 %v351, %v351
    %v358 = vpack.c.bf16 %v352, %v352
    %v359 = vpack.c.bf16 %v353, %v353
    %v360 = vpack.c.bf16 %v354, %v354
    %v361 = vpack.c.bf16 %v355, %v355
    %v362 = vpack.c.bf16 %v356, %v356
    %v363 = vld [vmem:[#allocation7] sm:$0xf]
    %v364 = vld [vmem:[#allocation7 + $0x4] sm:$0xf]
    %v365 = vld [vmem:[#allocation7 + $0x8] sm:$0xf]
    %v366 = vld [vmem:[#allocation7 + $0xc] sm:$0xf]
    %v367 = vld [vmem:[#allocation7 + $0x10] sm:$0xf]
    %v368 = vld [vmem:[#allocation7 + $0x14] sm:$0xf]
    %v369 = vld [vmem:[#allocation7 + $0x18] sm:$0xf]
    %v370 = vld [vmem:[#allocation7 + $0x1c] sm:$0xf]
    %v371 = vld [vmem:[#allocation7 + $0x20] sm:$0xf]
    %v372 = vld [vmem:[#allocation7 + $0x24] sm:$0xf]
    %v373 = vld [vmem:[#allocation7 + $0x28] sm:$0xf]
    %v374 = vld [vmem:[#allocation7 + $0x2c] sm:$0xf]
    %v375 = vld [vmem:[#allocation7 + $0x30] sm:$0xf]
    %v376 = vld [vmem:[#allocation7 + $0x34] sm:$0xf]
    %v377 = vld [vmem:[#allocation7 + $0x38] sm:$0xf]
    %v378 = vld [vmem:[#allocation7 + $0x3c] sm:$0xf]
    %v379 = vld [vmem:[#allocation7 + $0x40] sm:$0xf]
    %v380 = vld [vmem:[#allocation7 + $0x44] sm:$0xf]
    %v381 = vld [vmem:[#allocation7 + $0x48] sm:$0xf]
    %v382 = vld [vmem:[#allocation7 + $0x4c] sm:$0xf]
    %v383 = vld [vmem:[#allocation7 + $0x50] sm:$0xf]
    %v384 = vld [vmem:[#allocation7 + $0x54] sm:$0xf]
    %v385 = vld [vmem:[#allocation7 + $0x58] sm:$0xf]
    %v386 = vld [vmem:[#allocation7 + $0x5c] sm:$0xf]
    %v387 = vld [vmem:[#allocation7 + $0x60] sm:$0xf]
    %v388 = vld [vmem:[#allocation7 + $0x64] sm:$0xf]
    %v389 = vld [vmem:[#allocation7 + $0x68] sm:$0xf]
    %v390 = vld [vmem:[#allocation7 + $0x6c] sm:$0xf]
    %v391 = vld [vmem:[#allocation7 + $0x70] sm:$0xf]
    %v392 = vld [vmem:[#allocation7 + $0x74] sm:$0xf]
    %v393 = vld [vmem:[#allocation7 + $0x78] sm:$0xf]
    %v394 = vld [vmem:[#allocation7 + $0x7c] sm:$0xf]
    %v395 = vld [vmem:[#allocation7 + $0x80] sm:$0xf]
    %v396 = vld [vmem:[#allocation7 + $0x84] sm:$0xf]
    %v397 = vld [vmem:[#allocation7 + $0x88] sm:$0xf]
    %v398 = vld [vmem:[#allocation7 + $0x8c] sm:$0xf]
    %v399 = vld [vmem:[#allocation7 + $0x90] sm:$0xf]
    %v400 = vld [vmem:[#allocation7 + $0x94] sm:$0xf]
    %v401 = vld [vmem:[#allocation7 + $0x98] sm:$0xf]
    %v402 = vld [vmem:[#allocation7 + $0x9c] sm:$0xf]
    %v403 = vld [vmem:[#allocation7 + $0xa0] sm:$0xf]
    %v404 = vld [vmem:[#allocation7 + $0xa4] sm:$0xf]
    %v405 = vld [vmem:[#allocation7 + $0xa8] sm:$0xf]
    %v406 = vld [vmem:[#allocation7 + $0xac] sm:$0xf]
    %v407 = vld [vmem:[#allocation7 + $0xb0] sm:$0xf]
    %v408 = vld [vmem:[#allocation7 + $0xb4] sm:$0xf]
    %v409 = vld [vmem:[#allocation7 + $0xb8] sm:$0xf]
    %v410 = vld [vmem:[#allocation7 + $0xbc] sm:$0xf]
    %v411 = vld [vmem:[#allocation7 + $0xc0] sm:$0xf]
    %v412 = vld [vmem:[#allocation7 + $0xc4] sm:$0xf]
    %v413 = vld [vmem:[#allocation7 + $0xc8] sm:$0xf]
    %v414 = vld [vmem:[#allocation7 + $0xcc] sm:$0xf]
    %v415 = vld [vmem:[#allocation7 + $0xd0] sm:$0xf]
    %v416 = vld [vmem:[#allocation7 + $0xd4] sm:$0xf]
    %v417 = vld [vmem:[#allocation7 + $0xd8] sm:$0xf]
    %v418 = vld [vmem:[#allocation7 + $0xdc] sm:$0xf]
    %v419 = vld [vmem:[#allocation7 + $0xe0] sm:$0xf]
    %v420 = vld [vmem:[#allocation7 + $0xe4] sm:$0xf]
    %v421 = vld [vmem:[#allocation7 + $0xe8] sm:$0xf]
    %v422 = vld [vmem:[#allocation7 + $0xec] sm:$0xf]
    %v423 = vld [vmem:[#allocation7 + $0xf0] sm:$0xf]
    %v424 = vld [vmem:[#allocation7 + $0xf4] sm:$0xf]
    %v425 = vld [vmem:[#allocation7 + $0xf8] sm:$0xf]
    %v426 = vld [vmem:[#allocation7 + $0xfc] sm:$0xf]
    %v427 = vld [vmem:[#allocation7 + $0x100] sm:$0xf]
    %v428 = vld [vmem:[#allocation7 + $0x104] sm:$0xf]
    %v429 = vld [vmem:[#allocation7 + $0x108] sm:$0xf]
    %v430 = vld [vmem:[#allocation7 + $0x10c] sm:$0xf]
    %v431 = vld [vmem:[#allocation7 + $0x110] sm:$0xf]
    %v432 = vld [vmem:[#allocation7 + $0x114] sm:$0xf]
    %v433 = vld [vmem:[#allocation7 + $0x118] sm:$0xf]
    %v434 = vld [vmem:[#allocation7 + $0x11c] sm:$0xf]
    %v435 = vld [vmem:[#allocation7 + $0x120] sm:$0xf]
    %v436 = vld [vmem:[#allocation7 + $0x124] sm:$0xf]
    %v437 = vld [vmem:[#allocation7 + $0x128] sm:$0xf]
    %v438 = vld [vmem:[#allocation7 + $0x12c] sm:$0xf]
    %v439 = vld [vmem:[#allocation7 + $0x130] sm:$0xf]
    %v440 = vld [vmem:[#allocation7 + $0x134] sm:$0xf]
    %v441 = vld [vmem:[#allocation7 + $0x138] sm:$0xf]
    %v442 = vld [vmem:[#allocation7 + $0x13c] sm:$0xf]
    %v443 = vld [vmem:[#allocation7 + $0x140] sm:$0xf]
    %v444 = vld [vmem:[#allocation7 + $0x144] sm:$0xf]
    %v445 = vld [vmem:[#allocation7 + $0x148] sm:$0xf]
    %v446 = vld [vmem:[#allocation7 + $0x14c] sm:$0xf]
    %v447 = vld [vmem:[#allocation7 + $0x150] sm:$0xf]
    %v448 = vld [vmem:[#allocation7 + $0x154] sm:$0xf]
    %v449 = vld [vmem:[#allocation7 + $0x158] sm:$0xf]
    %v450 = vld [vmem:[#allocation7 + $0x15c] sm:$0xf]
    %v451 = vld [vmem:[#allocation7 + $0x160] sm:$0xf]
    %v452 = vld [vmem:[#allocation7 + $0x164] sm:$0xf]
    %v453 = vld [vmem:[#allocation7 + $0x168] sm:$0xf]
    %v454 = vld [vmem:[#allocation7 + $0x16c] sm:$0xf]
    %v455 = vld [vmem:[#allocation7 + $0x170] sm:$0xf]
    %v456 = vld [vmem:[#allocation7 + $0x174] sm:$0xf]
    %v457 = vld [vmem:[#allocation7 + $0x178] sm:$0xf]
    %v458 = vld [vmem:[#allocation7 + $0x17c] sm:$0xf]
    %v459 = vld [vmem:[#allocation8] sm:$0x1]
    %v460 = vlaneseq
    %v461 = vshrl.u32 %v460, 7
    %v462 = vsub.s32 0, %v461
    %v463 = vrot.slane %v459, %v462
    %v560 = vunpack.c.l.b16 %v363
    %v561 = vunpack.c.l.b16 %v364
    %v562 = vunpack.c.l.b16 %v365
    %v563 = vunpack.c.l.b16 %v366
    %v564 = vunpack.c.l.b16 %v367
    %v565 = vunpack.c.l.b16 %v368
    %v566 = vunpack.c.l.b16 %v369
    %v567 = vunpack.c.l.b16 %v370
    %v568 = vunpack.c.l.b16 %v371
    %v569 = vunpack.c.l.b16 %v372
    %v570 = vunpack.c.l.b16 %v373
    %v571 = vunpack.c.l.b16 %v374
    %v572 = vunpack.c.l.b16 %v375
    %v573 = vunpack.c.l.b16 %v376
    %v574 = vunpack.c.l.b16 %v377
    %v575 = vunpack.c.l.b16 %v378
    %v576 = vunpack.c.l.b16 %v379
    %v577 = vunpack.c.l.b16 %v380
    %v578 = vunpack.c.l.b16 %v381
    %v579 = vunpack.c.l.b16 %v382
    %v580 = vunpack.c.l.b16 %v383
    %v581 = vunpack.c.l.b16 %v384
    %v582 = vunpack.c.l.b16 %v385
    %v583 = vunpack.c.l.b16 %v386
    %v584 = vunpack.c.l.b16 %v387
    %v585 = vunpack.c.l.b16 %v388
    %v586 = vunpack.c.l.b16 %v389
    %v587 = vunpack.c.l.b16 %v390
    %v588 = vunpack.c.l.b16 %v391
    %v589 = vunpack.c.l.b16 %v392
    %v590 = vunpack.c.l.b16 %v393
    %v591 = vunpack.c.l.b16 %v394
    %v592 = vunpack.c.l.b16 %v395
    %v593 = vunpack.c.l.b16 %v396
    %v594 = vunpack.c.l.b16 %v397
    %v595 = vunpack.c.l.b16 %v398
    %v596 = vunpack.c.l.b16 %v399
    %v597 = vunpack.c.l.b16 %v400
    %v598 = vunpack.c.l.b16 %v401
    %v599 = vunpack.c.l.b16 %v402
    %v600 = vunpack.c.l.b16 %v403
    %v601 = vunpack.c.l.b16 %v404
    %v602 = vunpack.c.l.b16 %v405
    %v603 = vunpack.c.l.b16 %v406
    %v604 = vunpack.c.l.b16 %v407
    %v605 = vunpack.c.l.b16 %v408
    %v606 = vunpack.c.l.b16 %v409
    %v607 = vunpack.c.l.b16 %v410
    %v608 = vunpack.c.l.b16 %v411
    %v609 = vunpack.c.l.b16 %v412
    %v610 = vunpack.c.l.b16 %v413
    %v611 = vunpack.c.l.b16 %v414
    %v612 = vunpack.c.l.b16 %v415
    %v613 = vunpack.c.l.b16 %v416
    %v614 = vunpack.c.l.b16 %v417
    %v615 = vunpack.c.l.b16 %v418
    %v616 = vunpack.c.l.b16 %v419
    %v617 = vunpack.c.l.b16 %v420
    %v618 = vunpack.c.l.b16 %v421
    %v619 = vunpack.c.l.b16 %v422
    %v620 = vunpack.c.l.b16 %v423
    %v621 = vunpack.c.l.b16 %v424
    %v622 = vunpack.c.l.b16 %v425
    %v623 = vunpack.c.l.b16 %v426
    %v624 = vunpack.c.l.b16 %v427
    %v625 = vunpack.c.l.b16 %v428
    %v626 = vunpack.c.l.b16 %v429
    %v627 = vunpack.c.l.b16 %v430
    %v628 = vunpack.c.l.b16 %v431
    %v629 = vunpack.c.l.b16 %v432
    %v630 = vunpack.c.l.b16 %v433
    %v631 = vunpack.c.l.b16 %v434
    %v632 = vunpack.c.l.b16 %v435
    %v633 = vunpack.c.l.b16 %v436
    %v634 = vunpack.c.l.b16 %v437
    %v635 = vunpack.c.l.b16 %v438
    %v636 = vunpack.c.l.b16 %v439
    %v637 = vunpack.c.l.b16 %v440
    %v638 = vunpack.c.l.b16 %v441
    %v639 = vunpack.c.l.b16 %v442
    %v640 = vunpack.c.l.b16 %v443
    %v641 = vunpack.c.l.b16 %v444
    %v642 = vunpack.c.l.b16 %v445
    %v643 = vunpack.c.l.b16 %v446
    %v644 = vunpack.c.l.b16 %v447
    %v645 = vunpack.c.l.b16 %v448
    %v646 = vunpack.c.l.b16 %v449
    %v647 = vunpack.c.l.b16 %v450
    %v648 = vunpack.c.l.b16 %v451
    %v649 = vunpack.c.l.b16 %v452
    %v650 = vunpack.c.l.b16 %v453
    %v651 = vunpack.c.l.b16 %v454
    %v652 = vunpack.c.l.b16 %v455
    %v653 = vunpack.c.l.b16 %v456
    %v654 = vunpack.c.l.b16 %v457
    %v655 = vunpack.c.l.b16 %v458
    %v656 = vpack.c.b16 %v561, %v560
    %v657 = vpack.c.b16 %v563, %v562
    %v658 = vpack.c.b16 %v565, %v564
    %v659 = vpack.c.b16 %v567, %v566
    %v660 = vpack.c.b16 %v569, %v568
    %v661 = vpack.c.b16 %v571, %v570
    %v662 = vpack.c.b16 %v573, %v572
    %v663 = vpack.c.b16 %v575, %v574
    %v664 = vpack.c.b16 %v577, %v576
    %v665 = vpack.c.b16 %v579, %v578
    %v666 = vpack.c.b16 %v581, %v580
    %v667 = vpack.c.b16 %v583, %v582
    %v668 = vpack.c.b16 %v585, %v584
    %v669 = vpack.c.b16 %v587, %v586
    %v670 = vpack.c.b16 %v589, %v588
    %v671 = vpack.c.b16 %v591, %v590
    %v672 = vpack.c.b16 %v593, %v592
    %v673 = vpack.c.b16 %v595, %v594
    %v674 = vpack.c.b16 %v597, %v596
    %v675 = vpack.c.b16 %v599, %v598
    %v676 = vpack.c.b16 %v601, %v600
    %v677 = vpack.c.b16 %v603, %v602
    %v678 = vpack.c.b16 %v605, %v604
    %v679 = vpack.c.b16 %v607, %v606
    %v680 = vpack.c.b16 %v609, %v608
    %v681 = vpack.c.b16 %v611, %v610
    %v682 = vpack.c.b16 %v613, %v612
    %v683 = vpack.c.b16 %v615, %v614
    %v684 = vpack.c.b16 %v617, %v616
    %v685 = vpack.c.b16 %v619, %v618
    %v686 = vpack.c.b16 %v621, %v620
    %v687 = vpack.c.b16 %v623, %v622
    %v688 = vpack.c.b16 %v625, %v624
    %v689 = vpack.c.b16 %v627, %v626
    %v690 = vpack.c.b16 %v629, %v628
    %v691 = vpack.c.b16 %v631, %v630
    %v692 = vpack.c.b16 %v633, %v632
    %v693 = vpack.c.b16 %v635, %v634
    %v694 = vpack.c.b16 %v637, %v636
    %v695 = vpack.c.b16 %v639, %v638
    %v696 = vpack.c.b16 %v641, %v640
    %v697 = vpack.c.b16 %v643, %v642
    %v698 = vpack.c.b16 %v645, %v644
    %v699 = vpack.c.b16 %v647, %v646
    %v700 = vpack.c.b16 %v649, %v648
    %v701 = vpack.c.b16 %v651, %v650
    %v702 = vpack.c.b16 %v653, %v652
    %v703 = vpack.c.b16 %v655, %v654
    %752 = vmatprep.subr.bf16.mxu0 0
    %753 = vmatpush1.bf16.msra.mxu0 %v663
    %754 = vmatprep.subr.bf16.mxu0 0
    %755 = vmatpush1.bf16.msra.mxu0 %v662
    %756 = vmatprep.subr.bf16.mxu0 0
    %757 = vmatpush1.bf16.msra.mxu0 %v661
    %758 = vmatprep.subr.bf16.mxu0 0
    %759 = vmatpush1.bf16.msra.mxu0 %v660
    %760 = vmatprep.subr.bf16.mxu0 0
    %761 = vmatpush1.bf16.msra.mxu0 %v659
    %762 = vmatprep.subr.bf16.mxu0 0
    %763 = vmatpush1.bf16.msra.mxu0 %v658
    %764 = vmatprep.subr.bf16.mxu0 0
    %765 = vmatpush1.bf16.msra.mxu0 %v657
    %766 = vmatprep.subr.bf16.mxu0 0
    %767 = vmatpush1.bf16.msra.mxu0 %v656
    %768 = vmatprep.subr.bf16.mxu0 0
    %769 = vmatpush2.bf16.msra.mxu0 %v671
    %770 = vmatprep.subr.bf16.mxu0 0
    %771 = vmatpush2.bf16.msra.mxu0 %v670
    %772 = vmatprep.subr.bf16.mxu0 0
    %773 = vmatpush2.bf16.msra.mxu0 %v669
    %774 = vmatprep.subr.bf16.mxu0 0
    %775 = vmatpush2.bf16.msra.mxu0 %v668
    %776 = vmatprep.subr.bf16.mxu0 0
    %777 = vmatpush2.bf16.msra.mxu0 %v667
    %778 = vmatprep.subr.bf16.mxu0 0
    %779 = vmatpush2.bf16.msra.mxu0 %v666
    %780 = vmatprep.subr.bf16.mxu0 0
    %781 = vmatpush2.bf16.msra.mxu0 %v665
    %782 = vmatprep.subr.bf16.mxu0 0
    %783 = vmatpush2.bf16.msra.mxu0 %v664
    %784 = vmatprep.mubr.bf16.mxu0 %v358
    %785 = vmatmul.mubr.bf16.gmra.mxu0 %v357
    %v786 = vpop.f32.mrf.mxu0
    %v787 = vadd.f32 %v463, %v786
    %v788 = vpop.f32.mrf.mxu0
    %v789 = vpop.f32.mrf.mxu0
    %v790 = vpop.f32.mrf.mxu0
    %791 = vdwg.mxu0
    %792 = vmatprep.subr.bf16.mxu0 0
    %793 = vmatpush1.bf16.msra.mxu0 %v679
    %794 = vmatprep.subr.bf16.mxu0 0
    %795 = vmatpush1.bf16.msra.mxu0 %v678
    %796 = vmatprep.subr.bf16.mxu0 0
    %797 = vmatpush1.bf16.msra.mxu0 %v677
    %798 = vmatprep.subr.bf16.mxu0 0
    %799 = vmatpush1.bf16.msra.mxu0 %v676
    %800 = vmatprep.subr.bf16.mxu0 0
    %801 = vmatpush1.bf16.msra.mxu0 %v675
    %802 = vmatprep.subr.bf16.mxu0 0
    %803 = vmatpush1.bf16.msra.mxu0 %v674
    %804 = vmatprep.subr.bf16.mxu0 0
    %805 = vmatpush1.bf16.msra.mxu0 %v673
    %806 = vmatprep.subr.bf16.mxu0 0
    %807 = vmatpush1.bf16.msra.mxu0 %v672
    %808 = vmatprep.subr.bf16.mxu0 0
    %809 = vmatpush2.bf16.msra.mxu0 %v687
    %810 = vmatprep.subr.bf16.mxu0 0
    %811 = vmatpush2.bf16.msra.mxu0 %v686
    %812 = vmatprep.subr.bf16.mxu0 0
    %813 = vmatpush2.bf16.msra.mxu0 %v685
    %814 = vmatprep.subr.bf16.mxu0 0
    %815 = vmatpush2.bf16.msra.mxu0 %v684
    %816 = vmatprep.subr.bf16.mxu0 0
    %817 = vmatpush2.bf16.msra.mxu0 %v683
    %818 = vmatprep.subr.bf16.mxu0 0
    %819 = vmatpush2.bf16.msra.mxu0 %v682
    %820 = vmatprep.subr.bf16.mxu0 0
    %821 = vmatpush2.bf16.msra.mxu0 %v681
    %822 = vmatprep.subr.bf16.mxu0 0
    %823 = vmatpush2.bf16.msra.mxu0 %v680
    %824 = vmatprep.mubr.bf16.mxu0 %v360
    %825 = vmatmul.mubr.bf16.gmra.mxu0 %v359
    %v826 = vpop.f32.mrf.mxu0
    %v827 = vadd.f32 %v787, %v826
    %v828 = vpop.f32.mrf.mxu0
    %v829 = vpop.f32.mrf.mxu0
    %v830 = vpop.f32.mrf.mxu0
    %831 = vdwg.mxu0
    %832 = vmatprep.subr.bf16.mxu0 0
    %833 = vmatpush1.bf16.msra.mxu0 %v695
    %834 = vmatprep.subr.bf16.mxu0 0
    %835 = vmatpush1.bf16.msra.mxu0 %v694
    %836 = vmatprep.subr.bf16.mxu0 0
    %837 = vmatpush1.bf16.msra.mxu0 %v693
    %838 = vmatprep.subr.bf16.mxu0 0
    %839 = vmatpush1.bf16.msra.mxu0 %v692
    %840 = vmatprep.subr.bf16.mxu0 0
    %841 = vmatpush1.bf16.msra.mxu0 %v691
    %842 = vmatprep.subr.bf16.mxu0 0
    %843 = vmatpush1.bf16.msra.mxu0 %v690
    %844 = vmatprep.subr.bf16.mxu0 0
    %845 = vmatpush1.bf16.msra.mxu0 %v689
    %846 = vmatprep.subr.bf16.mxu0 0
    %847 = vmatpush1.bf16.msra.mxu0 %v688
    %848 = vmatprep.subr.bf16.mxu0 0
    %849 = vmatpush2.bf16.msra.mxu0 %v703
    %850 = vmatprep.subr.bf16.mxu0 0
    %851 = vmatpush2.bf16.msra.mxu0 %v702
    %852 = vmatprep.subr.bf16.mxu0 0
    %853 = vmatpush2.bf16.msra.mxu0 %v701
    %854 = vmatprep.subr.bf16.mxu0 0
    %855 = vmatpush2.bf16.msra.mxu0 %v700
    %856 = vmatprep.subr.bf16.mxu0 0
    %857 = vmatpush2.bf16.msra.mxu0 %v699
    %858 = vmatprep.subr.bf16.mxu0 0
    %859 = vmatpush2.bf16.msra.mxu0 %v698
    %860 = vmatprep.subr.bf16.mxu0 0
    %861 = vmatpush2.bf16.msra.mxu0 %v697
    %862 = vmatprep.subr.bf16.mxu0 0
    %863 = vmatpush2.bf16.msra.mxu0 %v696
    %864 = vmatprep.mubr.bf16.mxu0 %v362
    %865 = vmatmul.mubr.bf16.gmra.mxu0 %v361
    %v866 = vpop.f32.mrf.mxu0
    %v867 = vadd.f32 %v827, %v866
    %v868 = vpop.f32.mrf.mxu0
    %v869 = vpop.f32.mrf.mxu0
    %v870 = vpop.f32.mrf.mxu0
    %871 = vdwg.mxu0
    %v872 = vmax.f32 %v867, 0.0
    %v873 = vld [vmem:[#allocation8 + $0x10] sm:$0xff]
    %v874 = vld [vmem:[#allocation8 + $0x18] sm:$0xff]
    %v875 = vld [vmem:[#allocation8 + $0x20] sm:$0xff]
    %v876 = vld [vmem:[#allocation8 + $0x28] sm:$0xff]
    %v877 = vld [vmem:[#allocation8 + $0x30] sm:$0xff]
    %v878 = vld [vmem:[#allocation8 + $0x38] sm:$0xff]
    %v879 = vld [vmem:[#allocation8 + $0x40] sm:$0xff]
    %v880 = vld [vmem:[#allocation8 + $0x48] sm:$0xff]
    %v881 = vld [vmem:[#allocation8 + $0x50] sm:$0xff]
    %v882 = vld [vmem:[#allocation8 + $0x58] sm:$0xff]
    %v883 = vld [vmem:[#allocation8 + $0x60] sm:$0xff]
    %v884 = vld [vmem:[#allocation8 + $0x68] sm:$0xff]
    %v885 = vld [vmem:[#allocation8 + $0x70] sm:$0xff]
    %v886 = vld [vmem:[#allocation8 + $0x78] sm:$0xff]
    %v887 = vld [vmem:[#allocation8 + $0x80] sm:$0xff]
    %v888 = vld [vmem:[#allocation8 + $0x88] sm:$0xff]
    %v889 = vld [vmem:[#allocation8 + $0x8] sm:$0x1]
    %v890 = vlaneseq
    %v891 = vshrl.u32 %v890, 7
    %v892 = vsub.s32 0, %v891
    %v893 = vrot.slane %v889, %v892
    %894 = vmatprep.subr.mxu0 0.0
    %895 = vmatpush1.msra.mxu0 %v888
    %896 = vmatprep.subr.mxu0 0.0
    %897 = vmatpush1.msra.mxu0 %v887
    %898 = vmatprep.subr.mxu0 0.0
    %899 = vmatpush1.msra.mxu0 %v886
    %900 = vmatprep.subr.mxu0 0.0
    %901 = vmatpush1.msra.mxu0 %v885
    %902 = vmatprep.subr.mxu0 0.0
    %903 = vmatpush1.msra.mxu0 %v884
    %904 = vmatprep.subr.mxu0 0.0
    %905 = vmatpush1.msra.mxu0 %v883
    %906 = vmatprep.subr.mxu0 0.0
    %907 = vmatpush1.msra.mxu0 %v882
    %908 = vmatprep.subr.mxu0 0.0
    %909 = vmatpush1.msra.mxu0 %v881
    %910 = vmatprep.subr.mxu0 0.0
    %911 = vmatpush1.msra.mxu0 %v880
    %912 = vmatprep.subr.mxu0 0.0
    %913 = vmatpush1.msra.mxu0 %v879
    %914 = vmatprep.subr.mxu0 0.0
    %915 = vmatpush1.msra.mxu0 %v878
    %916 = vmatprep.subr.mxu0 0.0
    %917 = vmatpush1.msra.mxu0 %v877
    %918 = vmatprep.subr.mxu0 0.0
    %919 = vmatpush1.msra.mxu0 %v876
    %920 = vmatprep.subr.mxu0 0.0
    %921 = vmatpush1.msra.mxu0 %v875
    %922 = vmatprep.subr.mxu0 0.0
    %923 = vmatpush1.msra.mxu0 %v874
    %924 = vmatprep.subr.mxu0 0.0
    %925 = vmatpush1.msra.mxu0 %v873
    %926 = vmatprep.subr.mxu0 0.0
    %927 = vmatpush2.msra.mxu0 0.0
    %928 = vmatprep.subr.mxu0 0.0
    %929 = vmatpush2.msra.mxu0 0.0
    %930 = vmatprep.subr.mxu0 0.0
    %931 = vmatpush2.msra.mxu0 0.0
    %932 = vmatprep.subr.mxu0 0.0
    %933 = vmatpush2.msra.mxu0 0.0
    %934 = vmatprep.subr.mxu0 0.0
    %935 = vmatpush2.msra.mxu0 0.0
    %936 = vmatprep.subr.mxu0 0.0
    %937 = vmatpush2.msra.mxu0 0.0
    %938 = vmatprep.subr.mxu0 0.0
    %939 = vmatpush2.msra.mxu0 0.0
    %940 = vmatprep.subr.mxu0 0.0
    %941 = vmatpush2.msra.mxu0 0.0
    %942 = vmatprep.subr.mxu0 0.0
    %943 = vmatpush2.msra.mxu0 0.0
    %944 = vmatprep.subr.mxu0 0.0
    %945 = vmatpush2.msra.mxu0 0.0
    %946 = vmatprep.subr.mxu0 0.0
    %947 = vmatpush2.msra.mxu0 0.0
    %948 = vmatprep.subr.mxu0 0.0
    %949 = vmatpush2.msra.mxu0 0.0
    %950 = vmatprep.subr.mxu0 0.0
    %951 = vmatpush2.msra.mxu0 0.0
    %952 = vmatprep.subr.mxu0 0.0
    %953 = vmatpush2.msra.mxu0 0.0
    %954 = vmatprep.subr.mxu0 0.0
    %955 = vmatpush2.msra.mxu0 0.0
    %956 = vmatprep.subr.mxu0 0.0
    %957 = vmatpush2.msra.mxu0 0.0
    %958 = vmatprep.mubr.f32.mxu0 0.0
    %959 = vmatmul.mubr.f32.gmra.mxu0 %v872
    %v960 = vpop.f32.mrf.mxu0
    %v961 = vadd.f32 %v893, %v960
    %v962 = vpop.f32.mrf.mxu0
    %963 = vdwg.mxu0
    %964 = vst [vmem:[#allocation10] sm:$0xff] %v961
    // Predicated region
    $region34: #{tpu_custom_call.1} parent=1 // pred_check
      _
    $region35: #{tpu_custom_call.1} parent=1 // pred_check_branch
      %966 = sbr.rel (0) target = $region37
    $region36: #{tpu_custom_call.1} parent=1 // pred_region
      %s968 = ssub.s32 128, 128
      %969 = vsyncadd [#allocation4], %s968
      %s971 = sshll.u32 [#allocation10], 4
      %s972 = int_to_ptr.vmem [resolvable:$true] %s971
      %974 = dma.vmem_to_hbm [thread:$0]  %s972, 128, %s4, [#allocation4]
    $region37: #{tpu_custom_call.1} parent=1 // pred_fallthru
      _
    // Predicated region
    $region38: #{tpu_custom_call.1} parent=1 // pred_check
      _
    $region39: #{tpu_custom_call.1} parent=1 // pred_check_branch
      %976 = sbr.rel (0) target = $region41
    $region40: #{tpu_custom_call.1} parent=1 // pred_region
      %977 = dma.done [#allocation4], 128
    $region41: #{tpu_custom_call.1} parent=1 // pred_fallthru
      _
    %978 = vsyncpa [#allocation3], 1
    %979 = vsyncpa [#allocation6], 1
    %980 = vsyncpa [#allocation9], 1
    %981 = vsyncpa [#allocation4], 1

</llo_original>
